<compile_context>
chip_gen: v5e
topology: v5e:2x2
jax: 0.10.0
libtpu: 0.0.40
codegen_flags: <defaults>
</compile_context>

<pallas_src>
import jax
import jax.numpy as jnp
from jax.experimental import pallas as pl
from jax.experimental.pallas import tpu as pltpu


# ---------------------------------------------------------------------------
# Pallas Mish kernel
# ---------------------------------------------------------------------------
def _mish_kernel(x_ref, o_ref):
    # Load in the HBM dtype, compute in f32 (v5e has no bf16 VPU/EUP).
    x = x_ref[...].astype(jnp.float32)
    # tanh(softplus(x)) == (e^2 + 2e) / (e^2 + 2e + 2)  with e = exp(x).
    # Clamp the exponent like torch.nn.functional.softplus (threshold=20):
    # for x > 20, softplus(x) ~= x and tanh(x) == 1 in f32.
    e = jnp.exp(jnp.minimum(x, 20.0))
    num = e * (e + 2.0)
    t = num * pl.reciprocal(num + 2.0, approx=True)
    t = jnp.where(x > 20.0, 1.0, t)
    o_ref[...] = (x * t).astype(o_ref.dtype)


def _pick_layout(n, itemsize):
    """Pick (rows, width, block_rows) with rows * width == n.

    width is a multiple of 128 (lane-dense), block_rows divides rows and is a
    multiple of 8 (or equals rows), and one block is ~<= 1 MiB per buffer.
    Returns None when n does not factor cleanly.
    """
    target_bytes = 1 << 20  # ~1 MiB per buffer; x2 in + x2 out dbuf ~= 4 MiB
    for width in (4096, 2048, 1024, 512, 256, 128):
        if n % width:
            continue
        rows = n // width
        max_rows = max(1, target_bytes // (width * itemsize))
        if rows <= max_rows:
            return rows, width, rows  # full-rows block (rows == full dim)
        start = min(max_rows, rows)
        start -= start % 8
        for br in range(start, 0, -8):
            if rows % br == 0:
                return rows, width, br
    return None


def mish(x: jax.Array) -> jax.Array:
    """Elementwise Mish via Pallas. Any shape / float dtype; same shape/dtype out."""
    orig_shape = x.shape
    orig_dtype = x.dtype
    n = x.size
    itemsize = jnp.dtype(orig_dtype).itemsize
    flat = x.reshape(-1)

    layout = _pick_layout(n, itemsize)
    if layout is not None:
        rows, width, block_rows = layout
        pad = 0
    else:
        # Ragged fallback: pad up to whole blocks (materializes one copy).
        width = 1024
        rows_unpadded = -(-n // width)
        block_rows = min(256, -(-rows_unpadded // 8) * 8)
        rows = -(-rows_unpadded // block_rows) * block_rows
        pad = rows * width - n
        flat = jnp.pad(flat, (0, pad))

    x2d = flat.reshape(rows, width)  # keep original dtype through HBM
    grid = (rows // block_rows,)

    out2d = pl.pallas_call(
        _mish_kernel,
        out_shape=jax.ShapeDtypeStruct((rows, width), orig_dtype),
        grid_spec=pltpu.PrefetchScalarGridSpec(
            num_scalar_prefetch=0,
            grid=grid,
            in_specs=[pl.BlockSpec((block_rows, width), lambda i: (i, 0))],
            out_specs=pl.BlockSpec((block_rows, width), lambda i: (i, 0)),
        ),
        compiler_params=pltpu.CompilerParams(
            dimension_semantics=("parallel",),
        ),
    )(x2d)

    out = out2d.reshape(-1)
    if pad:
        out = out[:n]
    return out.reshape(orig_shape)


def mish_ref(x):
    """Exact reference Mish (matches torch semantics, softplus threshold=20)."""
    sp = jnp.where(x > 20.0, x, jnp.log1p(jnp.exp(jnp.minimum(x, 20.0))))
    return x * jnp.tanh(sp)


# ---------------------------------------------------------------------------
# C3TR forward (convs via XLA, BN folded, Mish via the Pallas kernel)
# ---------------------------------------------------------------------------
# TODO(synk): Conv2d / BatchNorm2d run through lax.conv_general_dilated with
# the BN affine folded into the conv weights/bias, not a hand-written Pallas
# conv kernel.
def conv_bn_mish(p, x, act=mish, eps=1e-5):
    scale = p["gamma"] / jnp.sqrt(p["var"] + eps)
    w_f = p["w"] * scale[:, None, None, None]
    bias = p["beta"] - p["mean"] * scale
    pad = p["w"].shape[-1] // 2
    y = jax.lax.conv_general_dilated(
        x,
        w_f,
        window_strides=(1, 1),
        padding=[(pad, pad), (pad, pad)],
        dimension_numbers=("NCHW", "OIHW", "NCHW"),
    )
    y = y + bias[None, :, None, None]
    return act(y)


def transition_region(p, x, act=mish):
    return conv_bn_mish(p["conv1"], x, act) + conv_bn_mish(p["conv2"], x, act)


def c3tr_forward(params, x, act=mish):
    x1 = conv_bn_mish(params["conv1"], x, act)
    x2 = conv_bn_mish(params["conv2"], x, act)
    for tp in params["tr_blocks"]:
        x2 = transition_region(tp, x2, act)
    x2 = conv_bn_mish(params["conv3"], x2, act)
    xcat = jnp.concatenate([x1, x2], axis=1)
    return conv_bn_mish(params["conv_out"], xcat, act)


# ---------------------------------------------------------------------------
# Deterministic parameter init (conv weight + BN running stats / affine)
# ---------------------------------------------------------------------------
def init_conv_bn_mish(key, cin, cout, k):
    kw, kg, kb, km, kv = jax.random.split(key, 5)
    fan_in = cin * k * k
    return {
        "w": jax.random.normal(kw, (cout, cin, k, k), jnp.float32) / jnp.sqrt(fan_in),
        "gamma": 1.0 + 0.1 * jax.random.normal(kg, (cout,), jnp.float32),
        "beta": 0.1 * jax.random.normal(kb, (cout,), jnp.float32),
        "mean": 0.1 * jax.random.normal(km, (cout,), jnp.float32),
        "var": 1.0 + 0.1 * jnp.abs(jax.random.normal(kv, (cout,), jnp.float32)),
    }


def init_c3tr(key, in_channels, out_channels, n=1):
    mid = out_channels // 2
    keys = jax.random.split(key, 4 + 2 * n)
    return {
        "conv1": init_conv_bn_mish(keys[0], in_channels, mid, 1),
        "conv2": init_conv_bn_mish(keys[1], in_channels, mid, 1),
        "conv3": init_conv_bn_mish(keys[2], mid, mid, 1),
        "conv_out": init_conv_bn_mish(keys[3], out_channels, out_channels, 1),
        "tr_blocks": [
            {
                "conv1": init_conv_bn_mish(keys[4 + 2 * i], mid, mid, 1),
                "conv2": init_conv_bn_mish(keys[5 + 2 * i], mid, mid, 3),
            }
            for i in range(n)
        ],
    }


if __name__ == "__main__":
    key = jax.random.PRNGKey(0)
    k_x, k_p = jax.random.split(key)

    in_channels, out_channels, n_blocks = 8, 8, 1
    x = jax.random.normal(k_x, (2, in_channels, 16, 16), dtype=jnp.float32)
    params = init_c3tr(k_p, in_channels, out_channels, n=n_blocks)

    # Direct check of the Pallas Mish kernel (approx reciprocal -> loose tol).
    ym = mish(x)
    jax.block_until_ready(ym)
    assert ym.shape == x.shape and ym.dtype == x.dtype
    assert jnp.allclose(ym, mish_ref(x), atol=5e-3, rtol=5e-3)

    # Full C3TR forward with the Pallas activation vs. an exact pure-JAX ref.
    y = c3tr_forward(params, x, act=mish)
    jax.block_until_ready(y)
    ref = c3tr_forward(params, x, act=mish_ref)
    assert y.shape == (2, out_channels, 16, 16) and y.dtype == x.dtype
    assert jnp.allclose(y, ref, atol=2e-2, rtol=2e-2)

    print("KERNEL_OK")
</pallas_src>

<mosaic_0001>
module attributes {stable_mosaic.version = 11 : i64} {
  func.func @_mish_kernel(%arg0: i32, %arg1: memref<1x4096xf32, #tpu.memory_space<vmem>>, %arg2: memref<1x4096xf32, #tpu.memory_space<vmem>>) attributes {dimension_semantics = [#tpu.dimension_semantics<parallel>], iteration_bounds = array<i64: 1>, scalar_prefetch = 0 : i64, scratch_operands = 0 : i64, tpu.core_type = #tpu.core_type<tc>, window_params = [{transform_indices = @transform_0, window_bounds = array<i64: 1, 4096>}, {transform_indices = @transform_1, window_bounds = array<i64: 1, 4096>}]} {
    %c0 = arith.constant 0 : index
    %c0_0 = arith.constant 0 : index
    %0 = vector.load %arg1[%c0, %c0_0] : memref<1x4096xf32, #tpu.memory_space<vmem>>, vector<1x4096xf32>
    %cst = arith.constant 2.000000e+01 : f32
    %1 = vector.broadcast %cst : f32 to vector<1x4096xf32>
    %2 = arith.minimumf %0, %1 : vector<1x4096xf32>
    %3 = math.exp %2 : vector<1x4096xf32>
    %cst_1 = arith.constant 2.000000e+00 : f32
    %4 = vector.broadcast %cst_1 : f32 to vector<1x4096xf32>
    %5 = arith.addf %3, %4 : vector<1x4096xf32>
    %6 = arith.mulf %3, %5 : vector<1x4096xf32>
    %cst_2 = arith.constant 2.000000e+00 : f32
    %7 = vector.broadcast %cst_2 : f32 to vector<1x4096xf32>
    %8 = arith.addf %6, %7 : vector<1x4096xf32>
    %9 = tpu.reciprocal %8 {approx = true} : vector<1x4096xf32> -> vector<1x4096xf32>
    %10 = arith.mulf %6, %9 : vector<1x4096xf32>
    %cst_3 = arith.constant 2.000000e+01 : f32
    %11 = vector.broadcast %cst_3 : f32 to vector<1x4096xf32>
    %12 = arith.cmpf ogt, %0, %11 : vector<1x4096xf32>
    %cst_4 = arith.constant 1.000000e+00 : f32
    %13 = vector.broadcast %cst_4 : f32 to vector<1x4096xf32>
    %14 = arith.select %12, %13, %10 : vector<1x4096xi1>, vector<1x4096xf32>
    %15 = arith.mulf %0, %14 : vector<1x4096xf32>
    %c0_5 = arith.constant 0 : index
    %c0_6 = arith.constant 0 : index
    %16 = vector.load %arg2[%c0_5, %c0_6] : memref<1x4096xf32, #tpu.memory_space<vmem>>, vector<1x4096xf32>
    tpu.vector_store %arg2[%c0_5, %c0_6], %15 {strides = array<i32>} : memref<1x4096xf32, #tpu.memory_space<vmem>>, vector<1x4096xf32>,
    return
  }
  func.func @transform_0(%arg0: i32) -> (i32, i32) {
    %c0_i32 = arith.constant 0 : i32
    %c0_i32_0 = arith.constant 0 : i32
    return %arg0, %c0_i32 : i32, i32
  }
  func.func @transform_1(%arg0: i32) -> (i32, i32) {
    %c0_i32 = arith.constant 0 : i32
    %c0_i32_0 = arith.constant 0 : i32
    return %arg0, %c0_i32 : i32, i32
  }
}

</mosaic_0001>

<llo_original>
// kernel: tpu_custom_call.1
$region0: #{tpu_custom_call.1}
  #allocation0 [shape = 'u32[]', space=smem, size = 0x4, offset = 0x4, fixed_abs, tag = 'smem constant byte address 0x4 - core index']
  #allocation1 [shape = 'u32[72,128]{1,0:T(1,128)}', space=vmem, size = 0x9000, scoped, tag = 'internal scratch']
  %s0 = inlined_call_operand.hbm [shape: f32[1,4096], index: 0, kind: input, shape index: {}]
  %s1 = inlined_call_operand.hbm [shape: f32[1,4096], index: 1, kind: output, shape index: {}]
  %s2 = sld [smem:[#allocation0]]
  $region18: #{tpu_custom_call.1} parent=0
    _
  %s4 = ssub.s32 1, %s2
  %s5 = scalar_select 0, %s4, %s2
  $region1: #{tpu_custom_call.1} parent=0
    #allocation2 [shape = 'u8[16384]{0}', space=vmem, size = 0x4000, scoped, tag = 'input window, operand 0, single buffered']
    #allocation3 [shape = 's32[1]{0}', space=sflag, size = 0x4, scoped, tag = 'scoped memory for tpu_custom_call.1']
    #allocation4 [shape = 's32[1]{0}', space=sflag, size = 0x4, scoped, tag = 'scoped memory for tpu_custom_call.1']
    #allocation5 [shape = 'u8[16384]{0}', space=vmem, size = 0x4000, scoped, tag = 'output window, operand 0, single buffered']
    %6 = vsyncpa [#allocation3], 0
    %7 = vsyncpa [#allocation4], 0
    // Predicated region
    $region2: #{tpu_custom_call.1} parent=1 // pred_check
      _
    $region3: #{tpu_custom_call.1} parent=1 // pred_check_branch
      %9 = sbr.rel (0) target = $region5
    $region4: #{tpu_custom_call.1} parent=1 // pred_region
      %11 = vsyncadd [#allocation3], 0
      %s13 = sshll.u32 %s0, 4
      %s14 = int_to_ptr.hbm [resolvable:$true] %s13
      %s15 = sshll.u32 [#allocation2], 4
      %s16 = int_to_ptr.vmem [resolvable:$true] %s15
      %18 = dma.hbm_to_vmem [thread:$0]  %s14, 512, %s16, [#allocation3]
    $region5: #{tpu_custom_call.1} parent=1 // pred_fallthru
      _
    // Predicated region
    $region6: #{tpu_custom_call.1} parent=1 // pred_check
      _
    $region7: #{tpu_custom_call.1} parent=1 // pred_check_branch
      %20 = sbr.rel (0) target = $region9
    $region8: #{tpu_custom_call.1} parent=1 // pred_region
      %22 = dma.done [#allocation3], 512
    $region9: #{tpu_custom_call.1} parent=1 // pred_fallthru
      _
    %v23 = vld [vmem:[#allocation2] sm:$0xff]
    %v24 = vld [vmem:[#allocation2 + $0x8] sm:$0xff]
    %v25 = vld [vmem:[#allocation2 + $0x10] sm:$0xff]
    %v26 = vld [vmem:[#allocation2 + $0x18] sm:$0xff]
    %v27 = vmin.f32 %v23, 20.0
    %v28 = vmin.f32 %v24, 20.0
    %v29 = vmin.f32 %v25, 20.0
    %v30 = vmin.f32 %v26, 20.0
    %v31 = vmul.f32 %v27, 1.442695
    %v32 = vpow.pop %v31
    %v33 = vmul.f32 %v28, 1.442695
    %v34 = vpow.pop %v33
    %v35 = vmul.f32 %v29, 1.442695
    %v36 = vpow.pop %v35
    %v37 = vmul.f32 %v30, 1.442695
    %v38 = vpow.pop %v37
    %v39 = vadd.f32 %v32, 2.0
    %v40 = vadd.f32 %v34, 2.0
    %v41 = vadd.f32 %v36, 2.0
    %v42 = vadd.f32 %v38, 2.0
    %v43 = vmul.f32 %v32, %v39
    %v44 = vmul.f32 %v34, %v40
    %v45 = vmul.f32 %v36, %v41
    %v46 = vmul.f32 %v38, %v42
    %v47 = vadd.f32 %v43, 2.0
    %v48 = vadd.f32 %v44, 2.0
    %v49 = vadd.f32 %v45, 2.0
    %v50 = vadd.f32 %v46, 2.0
    %v51 = vrcp.pop %v47
    %v52 = vrcp.pop %v48
    %v53 = vrcp.pop %v49
    %v54 = vrcp.pop %v50
    %v55 = vmul.f32 %v43, %v51
    %v56 = vmul.f32 %v44, %v52
    %v57 = vmul.f32 %v45, %v53
    %v58 = vmul.f32 %v46, %v54
    %vm59 = vcmp.gt.f32.partialorder %v23, 20.0
    %vm60 = vcmp.gt.f32.partialorder %v24, 20.0
    %vm61 = vcmp.gt.f32.partialorder %v25, 20.0
    %vm62 = vcmp.gt.f32.partialorder %v26, 20.0
    %v63 = vsel %vm59, 1.0, %v55
    %v64 = vsel %vm60, 1.0, %v56
    %v65 = vsel %vm61, 1.0, %v57
    %v66 = vsel %vm62, 1.0, %v58
    %v67 = vmul.f32 %v23, %v63
    %v68 = vmul.f32 %v24, %v64
    %v69 = vmul.f32 %v25, %v65
    %v70 = vmul.f32 %v26, %v66
    %71 = vst [vmem:[#allocation5] sm:$0xff] %v67
    %72 = vst [vmem:[#allocation5 + $0x8] sm:$0xff] %v68
    %73 = vst [vmem:[#allocation5 + $0x10] sm:$0xff] %v69
    %74 = vst [vmem:[#allocation5 + $0x18] sm:$0xff] %v70
    // Predicated region
    $region10: #{tpu_custom_call.1} parent=1 // pred_check
      _
    $region11: #{tpu_custom_call.1} parent=1 // pred_check_branch
      %76 = sbr.rel (0) target = $region13
    $region12: #{tpu_custom_call.1} parent=1 // pred_region
      %78 = vsyncadd [#allocation4], 0
      %s80 = sshll.u32 [#allocation5], 4
      %s81 = int_to_ptr.vmem [resolvable:$true] %s80
      %s82 = sshll.u32 %s1, 4
      %s83 = int_to_ptr.hbm [resolvable:$true] %s82
      %85 = dma.vmem_to_hbm [thread:$0]  %s81, 512, %s83, [#allocation4]
    $region13: #{tpu_custom_call.1} parent=1 // pred_fallthru
      _
    // Predicated region
    $region14: #{tpu_custom_call.1} parent=1 // pred_check
      _
    $region15: #{tpu_custom_call.1} parent=1 // pred_check_branch
      %87 = sbr.rel (0) target = $region17
    $region16: #{tpu_custom_call.1} parent=1 // pred_region
      %89 = dma.done [#allocation4], 512
    $region17: #{tpu_custom_call.1} parent=1 // pred_fallthru
      _
    %90 = vsyncpa [#allocation3], 1
    %91 = vsyncpa [#allocation4], 1

</llo_original>
